<compile_context>
chip_gen: v7x
topology: tpu7x:2x2x1
jax: 0.10.0
libtpu: 0.0.40
codegen_flags: <defaults>
</compile_context>

<pallas_src>
import math

import jax
import jax.numpy as jnp
from jax.experimental import pallas as pl
from jax.experimental.pallas import tpu as pltpu


def _round_up(n, m):
    return ((n + m - 1) // m) * m


def _cdiv(a, b):
    return (a + b - 1) // b


def _fusion_kernel(x_ref, e_ref, w1_ref, w2_ref, b_ref, o_ref):
    # Fused concat + linear for one batch tile:
    #   y = sum(x * w1_row, -1) + sum(extra * w2_row, -1) + b
    # VPU broadcast-multiply + XLU lane reduction; no MXU (N = 1).
    y = jnp.sum(x_ref[...] * w1_ref[...], axis=-1, keepdims=True)
    y = y + jnp.sum(e_ref[...] * w2_ref[...], axis=-1, keepdims=True)
    o_ref[...] = (y + b_ref[0, 0]).astype(o_ref.dtype)


def _choose_tb(B):
    """Batch tile size: multiple of 8 (sublane alignment), target 2048 rows.

    - B <= 1024: one tile covering the batch (grid of 1); splitting tiny batches only
      adds per-step overhead.
    - 1024 < B <= 4096: ~half the batch per tile so the "parallel" grid axis has >= 2
      steps and both v7x TensorCores get fed.
    - larger B: fixed 2048-row tiles (~4 MiB x-tile each; double-buffered set ~12 MiB).
    """
    TB_MAX = 2048
    if B <= 1024:
        return _round_up(max(B, 1), 8)
    if B <= 2 * TB_MAX:
        return _round_up(_cdiv(B, 2), 8)
    return TB_MAX


def extra_fusion_forward(x, extra, weight, bias, *, tb=None):
    """Forward pass of extra_fusion_network (eval mode).

    x:      (B, F1) float32
    extra:  (B, F2) float32, F1 + F2 == 502 in the original module
    weight: (1, F1+F2) float32  (torch Linear weight layout: out_features x in_features)
    bias:   (1,) float32
    returns (B, 1) float32
    """
    B, F1 = x.shape
    B2, F2 = extra.shape
    assert B2 == B
    assert weight.shape == (1, F1 + F2)

    # Split the weight row at the concat boundary; keep both pieces lane-dense.
    w1 = weight[:, :F1].astype(jnp.float32)       # (1, F1)
    w2 = weight[:, F1:].astype(jnp.float32)       # (1, F2)
    b = bias.reshape(1, 1).astype(jnp.float32)    # (1, 1) scalar -> SMEM

    TB = _choose_tb(B) if tb is None else tb
    assert TB % 8 == 0, "batch tile must be a multiple of 8 (sublane alignment)"

    # Ragged grid: no jnp.pad of the inputs.  The last (partial) block relies on Pallas
    # edge-block masking: invalid rows compute garbage that is never stored to HBM.
    grid = (_cdiv(B, TB),)

    bytes_accessed = B * (F1 + F2 + 1) * 4 + (F1 + F2 + 1) * 4
    cost = pl.CostEstimate(
        flops=2 * B * (F1 + F2),
        transcendentals=0,
        bytes_accessed=bytes_accessed,
    )

    out = pl.pallas_call(
        _fusion_kernel,
        out_shape=jax.ShapeDtypeStruct((B, 1), jnp.float32),
        grid_spec=pltpu.PrefetchScalarGridSpec(
            num_scalar_prefetch=0,
            grid=grid,
            in_specs=[
                pl.BlockSpec((TB, F1), lambda i: (i, 0)),      # x tile (streamed)
                pl.BlockSpec((TB, F2), lambda i: (i, 0)),      # extra tile (streamed)
                pl.BlockSpec((1, F1), lambda i: (0, 0)),       # w1 row (resident)
                pl.BlockSpec((1, F2), lambda i: (0, 0)),       # w2 row (resident)
                pl.BlockSpec(memory_space=pltpu.MemorySpace.SMEM),  # bias scalar
            ],
            out_specs=pl.BlockSpec((TB, 1), lambda i: (i, 0)),
        ),
        compiler_params=pltpu.CompilerParams(
            dimension_semantics=("parallel",),
            vmem_limit_bytes=32 * 1024 * 1024,
        ),
        cost_estimate=cost,
    )(x, extra, w1, w2, b)

    return out


def init_params(key):
    """Deterministic parameter init matching the PyTorch module.

    nn.Linear(502, 1):
      - weight: xavier_uniform_  -> U(-a, a), a = sqrt(6 / (fan_in + fan_out))
      - bias:   torch default    -> U(-1/sqrt(fan_in), 1/sqrt(fan_in))
    """
    in_f, out_f = 502, 1
    k_w, k_b = jax.random.split(key)
    a = math.sqrt(6.0 / (in_f + out_f))
    weight = jax.random.uniform(k_w, (out_f, in_f), jnp.float32, -a, a)
    bb = 1.0 / math.sqrt(in_f)
    bias = jax.random.uniform(k_b, (out_f,), jnp.float32, -bb, bb)
    return weight, bias


if __name__ == "__main__":
    key = jax.random.PRNGKey(0)
    k_params, k_x, k_e = jax.random.split(key, 3)

    weight, bias = init_params(k_params)

    F1, F2 = 500, 2  # concat along dim 1 -> 502 features total

    # Case 1: tiny batch, single (partial) block -> exercises block_shape > array rows.
    B = 4
    x = jax.random.normal(k_x, (B, F1), jnp.float32)
    extra = jax.random.normal(k_e, (B, F2), jnp.float32)
    y = jax.block_until_ready(extra_fusion_forward(x, extra, weight, bias))
    ref = jnp.concatenate([x, extra], axis=1) @ weight.T + bias
    assert y.shape == (B, 1)
    assert jnp.allclose(y, ref, atol=1e-4, rtol=1e-4)

    # Case 2: ragged multi-step grid at small shapes (B=20, tb=8 -> grid of 3 with a
    # partial edge block), exercising the no-pad edge-masking path.
    B2 = 20
    x2 = jax.random.normal(jax.random.fold_in(k_x, 1), (B2, F1), jnp.float32)
    e2 = jax.random.normal(jax.random.fold_in(k_e, 1), (B2, F2), jnp.float32)
    y2 = jax.block_until_ready(extra_fusion_forward(x2, e2, weight, bias, tb=8))
    ref2 = jnp.concatenate([x2, e2], axis=1) @ weight.T + bias
    assert y2.shape == (B2, 1)
    assert jnp.allclose(y2, ref2, atol=1e-4, rtol=1e-4)

    print("KERNEL_OK")
</pallas_src>

<mosaic_0001>
module attributes {stable_mosaic.version = 11 : i64} {
  func.func @_fusion_kernel(%arg0: i32, %arg1: memref<8x500xf32, #tpu.memory_space<vmem>>, %arg2: memref<8x2xf32, #tpu.memory_space<vmem>>, %arg3: memref<1x500xf32, #tpu.memory_space<vmem>>, %arg4: memref<1x2xf32, #tpu.memory_space<vmem>>, %arg5: memref<1x1xf32, #tpu.memory_space<smem>>, %arg6: memref<8x1xf32, #tpu.memory_space<vmem>>) attributes {dimension_semantics = [#tpu.dimension_semantics<parallel>], iteration_bounds = array<i64: 1>, scalar_prefetch = 0 : i64, scratch_operands = 0 : i64, tpu.core_type = #tpu.core_type<tc>, window_params = [{transform_indices = @transform_0, window_bounds = array<i64: 8, 500>}, {transform_indices = @transform_1, window_bounds = array<i64: 8, 2>}, {pipeline_mode = #tpu.pipeline_mode<synchronous>, transform_indices = @transform_2, window_bounds = array<i64: 1, 500>}, {pipeline_mode = #tpu.pipeline_mode<synchronous>, transform_indices = @transform_3, window_bounds = array<i64: 1, 2>}, {transform_indices = @transform_4, window_bounds = array<i64: 1, 1>}, {transform_indices = @transform_5, window_bounds = array<i64: 8, 1>}]} {
    %c0 = arith.constant 0 : index
    %c0_0 = arith.constant 0 : index
    %0 = vector.load %arg1[%c0, %c0_0] : memref<8x500xf32, #tpu.memory_space<vmem>>, vector<8x500xf32>
    %c0_1 = arith.constant 0 : index
    %c0_2 = arith.constant 0 : index
    %1 = vector.load %arg3[%c0_1, %c0_2] : memref<1x500xf32, #tpu.memory_space<vmem>>, vector<1x500xf32>
    %2 = vector.broadcast %1 : vector<1x500xf32> to vector<8x500xf32>
    %3 = arith.mulf %0, %2 : vector<8x500xf32>
    %cst = arith.constant dense<0.000000e+00> : vector<8xf32>
    %4 = vector.multi_reduction <add>, %3, %cst [1] : vector<8x500xf32> to vector<8xf32>
    %5 = vector.shape_cast %4 : vector<8xf32> to vector<8x1xf32>
    %c0_3 = arith.constant 0 : index
    %c0_4 = arith.constant 0 : index
    %6 = vector.load %arg2[%c0_3, %c0_4] : memref<8x2xf32, #tpu.memory_space<vmem>>, vector<8x2xf32>
    %c0_5 = arith.constant 0 : index
    %c0_6 = arith.constant 0 : index
    %7 = vector.load %arg4[%c0_5, %c0_6] : memref<1x2xf32, #tpu.memory_space<vmem>>, vector<1x2xf32>
    %8 = vector.broadcast %7 : vector<1x2xf32> to vector<8x2xf32>
    %9 = arith.mulf %6, %8 : vector<8x2xf32>
    %cst_7 = arith.constant dense<0.000000e+00> : vector<8xf32>
    %10 = vector.multi_reduction <add>, %9, %cst_7 [1] : vector<8x2xf32> to vector<8xf32>
    %11 = vector.shape_cast %10 : vector<8xf32> to vector<8x1xf32>
    %12 = arith.addf %5, %11 : vector<8x1xf32>
    %c0_8 = arith.constant 0 : index
    %c0_9 = arith.constant 0 : index
    %13 = memref.load %arg5[%c0_8, %c0_9] : memref<1x1xf32, #tpu.memory_space<smem>>
    %14 = vector.broadcast %13 : f32 to vector<8x1xf32>
    %15 = arith.addf %12, %14 : vector<8x1xf32>
    %c0_10 = arith.constant 0 : index
    %c0_11 = arith.constant 0 : index
    %16 = vector.load %arg6[%c0_10, %c0_11] : memref<8x1xf32, #tpu.memory_space<vmem>>, vector<8x1xf32>
    tpu.vector_store %arg6[%c0_10, %c0_11], %15 {strides = array<i32>} : memref<8x1xf32, #tpu.memory_space<vmem>>, vector<8x1xf32>,
    return
  }
  func.func @transform_0(%arg0: i32) -> (i32, i32) {
    %c0_i32 = arith.constant 0 : i32
    %c0_i32_0 = arith.constant 0 : i32
    return %arg0, %c0_i32 : i32, i32
  }
  func.func @transform_1(%arg0: i32) -> (i32, i32) {
    %c0_i32 = arith.constant 0 : i32
    %c0_i32_0 = arith.constant 0 : i32
    return %arg0, %c0_i32 : i32, i32
  }
  func.func @transform_2(%arg0: i32) -> (i32, i32) {
    %c0_i32 = arith.constant 0 : i32
    %c0_i32_0 = arith.constant 0 : i32
    %c0_i32_1 = arith.constant 0 : i32
    return %c0_i32, %c0_i32_0 : i32, i32
  }
  func.func @transform_3(%arg0: i32) -> (i32, i32) {
    %c0_i32 = arith.constant 0 : i32
    %c0_i32_0 = arith.constant 0 : i32
    %c0_i32_1 = arith.constant 0 : i32
    return %c0_i32, %c0_i32_0 : i32, i32
  }
  func.func @transform_4(%arg0: i32) -> (i32, i32) {
    %c0_i32 = arith.constant 0 : i32
    %c0_i32_0 = arith.constant 0 : i32
    %c0_i32_1 = arith.constant 0 : i32
    return %c0_i32, %c0_i32_0 : i32, i32
  }
  func.func @transform_5(%arg0: i32) -> (i32, i32) {
    %c0_i32 = arith.constant 0 : i32
    %c0_i32_0 = arith.constant 0 : i32
    return %arg0, %c0_i32 : i32, i32
  }
}

</mosaic_0001>

<llo_original>
// kernel: tpu_custom_call.1
$region0: #{tpu_custom_call.1}
  #allocation0 [shape = 'u32[]', space=smem, size = 0x4, offset = 0x4, fixed_abs, tag = 'smem constant byte address 0x4 - core index']
  #allocation1 [shape = 'u32[144,128]{1,0:T(1,128)}', space=vmem, size = 0x12000, scoped, tag = 'internal scratch']
  #allocation2 [shape = 'f32[1,1]{1,0:T(1,128)S(6)}', space=smem, size = 0x200, scoped, tag = 'scoped memory for tpu_custom_call.1']
  %s0 = inlined_call_operand.hbm [shape: f32[4,500], index: 0, kind: input, shape index: {}]
  %s1 = inlined_call_operand.vmem [shape: f32[4,2], index: 1, kind: input, shape index: {}]
  %s2 = inlined_call_operand.vmem [shape: f32[1,500], index: 2, kind: input, shape index: {}]
  %s3 = inlined_call_operand.vmem [shape: f32[1,2], index: 3, kind: input, shape index: {}]
  %s4 = inlined_call_operand.<no memory space> [shape: f32[1,1], index: 4, kind: input, shape index: {}]
  %s5 = inlined_call_operand.vmem [shape: f32[4,1], index: 5, kind: output, shape index: {}]
  %s6 = sld [smem:[#allocation0]]
  $region64: #{tpu_custom_call.1} parent=0
    _
  %s8 = ssub.s32 1, %s6
  %s9 = scalar_select 0, %s8, %s6
  %10 = sst [smem:[#allocation2]] %s4
  $region1: #{tpu_custom_call.1} parent=0
    #allocation3 [shape = 'u8[16384]{0}', space=vmem, size = 0x4000, scoped, tag = 'input window, operand 0, single buffered']
    #allocation4 [shape = 's32[1]{0}', space=sflag, size = 0x4, scoped, tag = 'scoped memory for tpu_custom_call.1']
    #allocation5 [shape = 'u8[4096]{0}', space=vmem, size = 0x1000, scoped, tag = 'output window, operand 0, single buffered']
    %11 = vsyncpa [#allocation4], 0
    // Predicated region
    $region2: #{tpu_custom_call.1} parent=1 // pred_check
      _
    $region3: #{tpu_custom_call.1} parent=1 // pred_check_branch
      %13 = sbr.rel (0) target = $region5
    $region4: #{tpu_custom_call.1} parent=1 // pred_region
      %s15 = ssub.s32 512, 256
      %16 = vsyncadd [#allocation4], %s15
      %s17 = sshll.u32 [#allocation3], 4
      %s18 = int_to_ptr.vmem [resolvable:$true] %s17
      %23 = dma.hbm_to_vmem [thread:$0]  %s0, 256, %s18, [#allocation4], 256, 256, 16
    $region5: #{tpu_custom_call.1} parent=1 // pred_fallthru
      _
    // Predicated region
    $region6: #{tpu_custom_call.1} parent=1 // pred_check
      _
    $region7: #{tpu_custom_call.1} parent=1 // pred_check_branch
      %25 = sbr.rel (0) target = $region9
    $region8: #{tpu_custom_call.1} parent=1 // pred_region
      _
    $region9: #{tpu_custom_call.1} parent=1 // pred_fallthru
      _
    // Predicated region
    $region10: #{tpu_custom_call.1} parent=1 // pred_check
      _
    $region11: #{tpu_custom_call.1} parent=1 // pred_check_branch
      %27 = sbr.rel (0) target = $region13
    $region12: #{tpu_custom_call.1} parent=1 // pred_region
      _
    $region13: #{tpu_custom_call.1} parent=1 // pred_fallthru
      _
    // Predicated region
    $region14: #{tpu_custom_call.1} parent=1 // pred_check
      _
    $region15: #{tpu_custom_call.1} parent=1 // pred_check_branch
      %29 = sbr.rel (0) target = $region17
    $region16: #{tpu_custom_call.1} parent=1 // pred_region
      _
    $region17: #{tpu_custom_call.1} parent=1 // pred_fallthru
      _
    // Predicated region
    $region18: #{tpu_custom_call.1} parent=1 // pred_check
      _
    $region19: #{tpu_custom_call.1} parent=1 // pred_check_branch
      %31 = sbr.rel (0) target = $region21
    $region20: #{tpu_custom_call.1} parent=1 // pred_region
      _
    $region21: #{tpu_custom_call.1} parent=1 // pred_fallthru
      _
    // Predicated region
    $region22: #{tpu_custom_call.1} parent=1 // pred_check
      _
    $region23: #{tpu_custom_call.1} parent=1 // pred_check_branch
      %33 = sbr.rel (0) target = $region25
    $region24: #{tpu_custom_call.1} parent=1 // pred_region
      %34 = dma.done [#allocation4], 512
    $region25: #{tpu_custom_call.1} parent=1 // pred_fallthru
      _
    %v35 = vld [vmem:[#allocation3] sm:$0xff]
    %v36 = vld [vmem:[#allocation3 + $0x8] sm:$0xff]
    %v37 = vld [vmem:[#allocation3 + $0x10] sm:$0xff]
    %v38 = vld [vmem:[#allocation3 + $0x18] sm:$0xff]
    %v39 = vld [vmem:[%s2] sm:$0xf]
    %v41 = vlaneseq
    %v42 = vshrl.u32 %v41, 7
    %v43 = vsub.s32 0, %v42
    %v44 = vrot.slane %v39, %v43
    %v45 = vlaneseq
    %v46 = vshrl.u32 %v45, 7
    %v47 = vsub.s32 1, %v46
    %v48 = vrot.slane %v39, %v47
    %v49 = vlaneseq
    %v50 = vshrl.u32 %v49, 7
    %v51 = vsub.s32 2, %v50
    %v52 = vrot.slane %v39, %v51
    %v53 = vlaneseq
    %v54 = vshrl.u32 %v53, 7
    %v55 = vsub.s32 3, %v54
    %v56 = vrot.slane %v39, %v55
    %v57 = vcombine.low %v44, %v48
    %v58 = vcombine.high %v44, %v48
    %v59 = vcombine.low %v52, %v56
    %v60 = vcombine.high %v52, %v56
    %v65 = vmul.f32 %v35, %v57
    %v66 = vmul.f32 %v36, %v59
    %v67 = vmul.f32 %v37, %v58
    %v68 = vmul.f32 %v38, %v60
    %v73 = vcombine.low %v65, %v67
    %v74 = vcombine.high %v65, %v67
    %v75 = vcombine.low %v66, %v68
    %v76 = vcombine.high %v66, %v68
    %v81 = vadd.f32 %v73, %v74
    %v82 = vadd.f32 %v81, %v75
    %vm83 = vcmask 949248
    %v84 = vsel %vm83, %v76, 0.0
    %v85 = vadd.f32 %v82, %v84
    %86 = vadd.xlane.f32.xlu0 %v85
    %v87 = vpop.xlane.xlu0 %86
    %v88 = vld [vmem:[%s1] sm:$0xff]
    %v89 = vld [vmem:[%s3] sm:$0x1]
    %v91 = vlaneseq
    %v92 = vshrl.u32 %v91, 7
    %v93 = vsub.s32 0, %v92
    %v94 = vrot.slane %v89, %v93
    %v96 = vmul.f32 %v88, %v94
    %vm97 = vcmask 15360
    %v98 = vsel %vm97, %v96, 0.0
    %99 = vadd.xlane.f32.xlu0 %v98
    %v100 = vpop.xlane.xlu0 %99
    %v101 = vadd.f32 %v87, %v100
    %s102 = sld [smem:[#allocation2]]
    %v103 = vstv %s102
    %v104 = vadd.f32 %v101, %v103
    %vm105 = vcmask 7168
    %106 = vst.msk [vmem:[#allocation5] sm:$0xff] %vm105, %v104
    // Predicated region
    $region26: #{tpu_custom_call.1} parent=1 // pred_check
      _
    $region27: #{tpu_custom_call.1} parent=1 // pred_check_branch
      %108 = sbr.rel (0) target = $region29
    $region28: #{tpu_custom_call.1} parent=1 // pred_region
      // Predicated region
      $region30: #{tpu_custom_call.1} parent=28 // pred_check
        _
      $region31: #{tpu_custom_call.1} parent=28 // pred_check_branch
        %110 = sbr.rel (0) target = $region33
      $region32: #{tpu_custom_call.1} parent=28 // pred_region
        // Predicated region
        $region34: #{tpu_custom_call.1} parent=32 // pred_check
          _
        $region35: #{tpu_custom_call.1} parent=32 // pred_check_branch
          %112 = sbr.rel target = $region37
        $region36: #{tpu_custom_call.1} parent=32 // pred_region
          // Predicated region
          $region49: #{tpu_custom_call.1} parent=36 // pred_check
            _
          $region50: #{tpu_custom_call.1} parent=36 // pred_check_branch
            %127 = sbr.rel (0) target = $region52
          $region51: #{tpu_custom_call.1} parent=36 // pred_region
            loop: start=0, step=1, limit=1
            $region53: #{tpu_custom_call.1} parent=51 // loop_pre_header
              _
            $region54: #{tpu_custom_call.1} parent=51 // loop_header
              %s130 = sphi 0, %s134
              %p131 = scmp.ge.s32.totalorder %s130, 1
              %s135 = sphi [#allocation5], [#allocation5]
              %s136 = sphi %s5, %s5
            $region55: #{tpu_custom_call.1} parent=51 // loop_header_branch
              %133 = sbr.rel (%p131) target = $region59
            $region56: #{tpu_custom_call.1} parent=51 // loop_body
              %v137 = vld [vmem:[%s135] sm:$0xf]
              %138 = vst [vmem:[%s136] sm:$0xf] %v137
            $region57: #{tpu_custom_call.1} parent=51 // loop_footer
              %s134 = sadd.s32 1, %s130
            $region58: #{tpu_custom_call.1} parent=51 // loop_footer_branch
              %129 = sbr.rel target = $region54
            $region59: #{tpu_custom_call.1} parent=51 // loop_exit
              _
          $region52: #{tpu_custom_call.1} parent=36 // pred_fallthru
            _
        $region37: #{tpu_custom_call.1} parent=32 // pred_fallthru
          _
        // Predicated region
        $region38: #{tpu_custom_call.1} parent=32 // pred_check
          _
        $region39: #{tpu_custom_call.1} parent=32 // pred_check_branch
          %114 = sbr.rel (0) target = $region41
        $region40: #{tpu_custom_call.1} parent=32 // pred_region
          loop: start=0, step=1, limit=1
          $region42: #{tpu_custom_call.1} parent=40 // loop_pre_header
            _
          $region43: #{tpu_custom_call.1} parent=40 // loop_header
            %s117 = sphi 0, %s121
            %p118 = scmp.ge.s32.totalorder %s117, 1
            %s122 = sphi [#allocation5], [#allocation5]
            %s123 = sphi %s5, %s5
          $region44: #{tpu_custom_call.1} parent=40 // loop_header_branch
            %120 = sbr.rel (%p118) target = $region48
          $region45: #{tpu_custom_call.1} parent=40 // loop_body
            %v124 = vld [vmem:[%s122] sm:$0xf]
            %125 = vst [vmem:[%s123] sm:$0xf] %v124
          $region46: #{tpu_custom_call.1} parent=40 // loop_footer
            %s121 = sadd.s32 1, %s117
          $region47: #{tpu_custom_call.1} parent=40 // loop_footer_branch
            %116 = sbr.rel target = $region43
          $region48: #{tpu_custom_call.1} parent=40 // loop_exit
            _
        $region41: #{tpu_custom_call.1} parent=32 // pred_fallthru
          _
      $region33: #{tpu_custom_call.1} parent=28 // pred_fallthru
        _
      %139 = vnop
    $region29: #{tpu_custom_call.1} parent=1 // pred_fallthru
      _
    // Predicated region
    $region60: #{tpu_custom_call.1} parent=1 // pred_check
      _
    $region61: #{tpu_custom_call.1} parent=1 // pred_check_branch
      %141 = sbr.rel (0) target = $region63
    $region62: #{tpu_custom_call.1} parent=1 // pred_region
      _
    $region63: #{tpu_custom_call.1} parent=1 // pred_fallthru
      _
    %142 = vsyncpa [#allocation4], 1

</llo_original>
